<compile_context>
chip_gen: v7x
topology: tpu7x:2x2x1
jax: 0.10.0
libtpu: 0.0.40
codegen_flags: <defaults>
</compile_context>

<pallas_src>
import numpy as np
import jax
import jax.numpy as jnp
from jax import lax
from jax.experimental import pallas as pl
from jax.experimental.pallas import tpu as pltpu


def _complex_convt_kernel(at_ref, bt_ref, cb_ref, or_ref, oi_ref):
    """One fused MXU matmul per tile.

    at_ref : (2K, tm)     im2col'ed [real; imag] input tile (K on sublanes, pixels on lanes)
    bt_ref : (2*Cp, 2K)   fused complex weight matrix [[Wr^T, -Wi^T], [Wi^T, Wr^T]]
    cb_ref : (2*Cp, 1)    fused bias [b_r - b_i ; b_r + b_i]
    or_ref : (Cp, tm)     real output tile  (lane dim = tm >= 128 -> unmasked stores)
    oi_ref : (Cp, tm)     imag output tile
    """
    res = jnp.dot(bt_ref[...], at_ref[...], preferred_element_type=jnp.float32)
    res = res + cb_ref[...]               # lane-broadcast bias add (VPU)
    cp = or_ref.shape[0]                  # multiple of 8 -> sublane-aligned slices
    or_ref[...] = res[:cp, :]
    oi_ref[...] = res[cp:, :]


def _upsample_and_pad_nchw(x, stride, padding, output_padding, dilation, ksize):
    """Zero-insert (transposed-conv stride) + edge pad (NCHW) so a stride-1 VALID conv
    with the spatially flipped kernel reproduces conv_transpose."""
    sh, sw = stride
    ph, pw = padding
    oph, opw = output_padding
    dh, dw = dilation
    kh, kw = ksize
    lo_h, hi_h = dh * (kh - 1) - ph, dh * (kh - 1) - ph + oph
    lo_w, hi_w = dw * (kw - 1) - pw, dw * (kw - 1) - pw + opw
    return lax.pad(
        x, jnp.float32(0.0),
        [(0, 0, 0), (0, 0, 0), (lo_h, hi_h, sh - 1), (lo_w, hi_w, sw - 1)])


def _im2col_kt(xp, kh, kw, dh, dw):
    """(N, C, Hp, Wp) -> (N, C*kh*kw, H_out*W_out): K ordered (c, i, j), output pixels on lanes."""
    n, c, hp, wp = xp.shape
    h_out = hp - dh * (kh - 1)
    w_out = wp - dw * (kw - 1)
    cols = []
    for i in range(kh):
        for j in range(kw):
            cols.append(xp[:, :, i * dh:i * dh + h_out, j * dw:j * dw + w_out])
    patches = jnp.stack(cols, axis=2)                       # (N, C, kh*kw, H_out, W_out)
    return patches.reshape(n, c * kh * kw, h_out * w_out), h_out, w_out


def _weight_matrix_t(w):
    """PyTorch conv_transpose weight (C_in, C_out, kH, kW) ->
    (C_out, C_in*kH*kW), spatially flipped, K ordered (c_in, kh, kw)."""
    wf = w[:, :, ::-1, ::-1]
    wf = jnp.transpose(wf, (1, 0, 2, 3))                    # (C_out, C_in, kH, kW)
    return wf.reshape(w.shape[1], -1)


def complex_conv_transpose2d(z, w_real, w_imag, b_real, b_imag,
                             stride=(1, 1), padding=(0, 0),
                             output_padding=(0, 0), dilation=(1, 1),
                             tm_target=512):
    """z: complex64 (N, C_in, H, W). weights: float32 (C_in, C_out, kH, kW). bias: (C_out,)."""
    n, c_in, h, w = z.shape
    c_in_w, c_out, kh, kw = w_real.shape
    assert c_in == c_in_w
    assert tm_target % 128 == 0

    # Real/imag stacked along the channel axis (kept NCHW -- no layout transpose needed).
    x_r = jnp.real(z).astype(jnp.float32)
    x_i = jnp.imag(z).astype(jnp.float32)
    xc = jnp.concatenate([x_r, x_i], axis=1)                # (N, 2*C_in, H, W)

    xp = _upsample_and_pad_nchw(xc, stride, padding, output_padding, dilation, (kh, kw))
    at, h_out, w_out = _im2col_kt(xp, kh, kw, dilation[0], dilation[1])   # (N, 2K, HW)
    k2 = at.shape[1]                                        # 2 * C_in * kH * kW

    hw = h_out * w_out
    tm = min(tm_target, pl.cdiv(hw, 128) * 128)             # lane tile, multiple of 128
    hwp = pl.cdiv(hw, tm) * tm
    if hwp != hw:
        at = jnp.pad(at, ((0, 0), (0, 0), (0, hwp - hw)))

    # Fused (transposed) complex weight matrix and bias, C_out padded to a sublane multiple.
    c_out_p = pl.cdiv(c_out, 8) * 8
    brt = _weight_matrix_t(w_real).astype(jnp.float32)      # (C_out, K)
    bit = _weight_matrix_t(w_imag).astype(jnp.float32)
    cbr = (b_real - b_imag).astype(jnp.float32)
    cbi = (b_real + b_imag).astype(jnp.float32)
    if c_out_p != c_out:
        brt = jnp.pad(brt, ((0, c_out_p - c_out), (0, 0)))
        bit = jnp.pad(bit, ((0, c_out_p - c_out), (0, 0)))
        cbr = jnp.pad(cbr, (0, c_out_p - c_out))
        cbi = jnp.pad(cbi, (0, c_out_p - c_out))
    bct = jnp.concatenate(
        [jnp.concatenate([brt, -bit], axis=1),
         jnp.concatenate([bit, brt], axis=1)], axis=0)      # (2*C_out_p, 2K)
    cb = jnp.concatenate([cbr, cbi]).reshape(2 * c_out_p, 1)

    grid = (n, hwp // tm)
    out_r, out_i = pl.pallas_call(
        _complex_convt_kernel,
        out_shape=(jax.ShapeDtypeStruct((n, c_out_p, hwp), jnp.float32),
                   jax.ShapeDtypeStruct((n, c_out_p, hwp), jnp.float32)),
        grid_spec=pltpu.PrefetchScalarGridSpec(
            num_scalar_prefetch=0,
            grid=grid,
            in_specs=[pl.BlockSpec((None, k2, tm), lambda b, j: (b, 0, j)),
                      pl.BlockSpec((2 * c_out_p, k2), lambda b, j: (0, 0)),
                      pl.BlockSpec((2 * c_out_p, 1), lambda b, j: (0, 0))],
            out_specs=[pl.BlockSpec((None, c_out_p, tm), lambda b, j: (b, 0, j)),
                       pl.BlockSpec((None, c_out_p, tm), lambda b, j: (b, 0, j))]),
        compiler_params=pltpu.CompilerParams(
            dimension_semantics=("parallel", "parallel"),
            vmem_limit_bytes=48 * 1024 * 1024),
    )(at, bct, cb)

    # Already in NCHW-compatible layout; slices are no-ops when shapes are aligned.
    out_r = out_r[:, :c_out, :hw].reshape(n, c_out, h_out, w_out)
    out_i = out_i[:, :c_out, :hw].reshape(n, c_out, h_out, w_out)
    return lax.complex(out_r, out_i)


def _ref_conv_transpose2d_real(x, w, b, stride, padding, output_padding, dilation):
    """Naive numpy reference for a real ConvTranspose2d (NCHW)."""
    n, c_in, h, wd = x.shape
    _, c_out, kh, kw = w.shape
    h_out = (h - 1) * stride[0] - 2 * padding[0] + dilation[0] * (kh - 1) + output_padding[0] + 1
    w_out = (wd - 1) * stride[1] - 2 * padding[1] + dilation[1] * (kw - 1) + output_padding[1] + 1
    out = np.zeros((n, c_out, h_out, w_out), np.float32)
    for nn_ in range(n):
        for ci in range(c_in):
            for ih in range(h):
                for iw in range(wd):
                    v = x[nn_, ci, ih, iw]
                    for khi in range(kh):
                        oh = ih * stride[0] + khi * dilation[0] - padding[0]
                        if oh < 0 or oh >= h_out:
                            continue
                        for kwi in range(kw):
                            ow = iw * stride[1] + kwi * dilation[1] - padding[1]
                            if ow < 0 or ow >= w_out:
                                continue
                            out[nn_, :, oh, ow] += v * w[ci, :, khi, kwi]
    return out + b[None, :, None, None]


def _run_case(key, n, c_in, c_out, h, w, ksize, stride, padding, output_padding, dilation):
    kh, kw = ksize
    k1, k2, k3, k4, k5, k6 = jax.random.split(key, 6)
    bound = 1.0 / np.sqrt(c_in * kh * kw)
    w_real = jax.random.uniform(k1, (c_in, c_out, kh, kw), jnp.float32, -bound, bound)
    w_imag = jax.random.uniform(k2, (c_in, c_out, kh, kw), jnp.float32, -bound, bound)
    b_real = jax.random.uniform(k3, (c_out,), jnp.float32, -bound, bound)
    b_imag = jax.random.uniform(k4, (c_out,), jnp.float32, -bound, bound)
    x_r = jax.random.normal(k5, (n, c_in, h, w), jnp.float32)
    x_i = jax.random.normal(k6, (n, c_in, h, w), jnp.float32)
    z = lax.complex(x_r, x_i)

    out = complex_conv_transpose2d(z, w_real, w_imag, b_real, b_imag,
                                   stride, padding, output_padding, dilation)
    out = jax.block_until_ready(out)
    out_np = np.asarray(out)

    xr_np, xi_np = np.asarray(x_r), np.asarray(x_i)
    wr_np, wi_np = np.asarray(w_real), np.asarray(w_imag)
    br_np, bi_np = np.asarray(b_real), np.asarray(b_imag)
    real_part = (_ref_conv_transpose2d_real(xr_np, wr_np, br_np, stride, padding, output_padding, dilation)
                 - _ref_conv_transpose2d_real(xi_np, wi_np, bi_np, stride, padding, output_padding, dilation))
    imag_part = (_ref_conv_transpose2d_real(xi_np, wr_np, br_np, stride, padding, output_padding, dilation)
                 + _ref_conv_transpose2d_real(xr_np, wi_np, bi_np, stride, padding, output_padding, dilation))
    assert out_np.shape == real_part.shape, (out_np.shape, real_part.shape)
    np.testing.assert_allclose(out_np.real, real_part, rtol=1e-3, atol=1e-3)
    np.testing.assert_allclose(out_np.imag, imag_part, rtol=1e-3, atol=1e-3)


if __name__ == "__main__":
    key = jax.random.PRNGKey(0)
    k_a, k_b = jax.random.split(key)

    # Case 1: typical upsampling deconv (stride 2): (2, 4, 8, 8) -> (2, 8, 16, 16).
    _run_case(k_a, n=2, c_in=4, c_out=8, h=8, w=8, ksize=(3, 3),
              stride=(2, 2), padding=(1, 1), output_padding=(1, 1), dilation=(1, 1))

    # Case 2: ragged shapes exercising C_out padding, lane padding, dilation, asymmetric
    # stride/padding and negative edge crop: (1, 3, 5, 6) -> (1, 5, 9, 9).
    _run_case(k_b, n=1, c_in=3, c_out=5, h=5, w=6, ksize=(3, 2),
              stride=(1, 2), padding=(0, 2), output_padding=(0, 1), dilation=(2, 1))

    print("KERNEL_OK")
</pallas_src>

<mosaic_0001>
module attributes {stable_mosaic.version = 11 : i64} {
  func.func @_complex_convt_kernel(%arg0: i32, %arg1: i32, %arg2: memref<1x72x256xf32, #tpu.memory_space<vmem>>, %arg3: memref<16x72xf32, #tpu.memory_space<vmem>>, %arg4: memref<16x1xf32, #tpu.memory_space<vmem>>, %arg5: memref<1x8x256xf32, #tpu.memory_space<vmem>>, %arg6: memref<1x8x256xf32, #tpu.memory_space<vmem>>) attributes {dimension_semantics = [#tpu.dimension_semantics<parallel>, #tpu.dimension_semantics<parallel>], iteration_bounds = array<i64: 2, 1>, scalar_prefetch = 0 : i64, scratch_operands = 0 : i64, tpu.core_type = #tpu.core_type<tc>, window_params = [{transform_indices = @transform_0, window_bounds = array<i64: 1, 72, 256>}, {pipeline_mode = #tpu.pipeline_mode<synchronous>, transform_indices = @transform_1, window_bounds = array<i64: 16, 72>}, {pipeline_mode = #tpu.pipeline_mode<synchronous>, transform_indices = @transform_2, window_bounds = array<i64: 16, 1>}, {transform_indices = @transform_3, window_bounds = array<i64: 1, 8, 256>}, {transform_indices = @transform_4, window_bounds = array<i64: 1, 8, 256>}]} {
    %c0 = arith.constant 0 : index
    %c0_0 = arith.constant 0 : index
    %0 = vector.load %arg3[%c0, %c0_0] : memref<16x72xf32, #tpu.memory_space<vmem>>, vector<16x72xf32>
    %c0_1 = arith.constant 0 : index
    %c0_2 = arith.constant 0 : index
    %c0_3 = arith.constant 0 : index
    %1 = vector.load %arg2[%c0_1, %c0_2, %c0_3] : memref<1x72x256xf32, #tpu.memory_space<vmem>>, vector<1x72x256xf32>
    %2 = vector.shape_cast %1 : vector<1x72x256xf32> to vector<72x256xf32>
    %cst = arith.constant dense<0.000000e+00> : vector<16x256xf32>
    %3 = tpu.matmul %0, %2, %cst {dimension_numbers = #tpu.dot_dimension_numbers<[1], [0], [0], [1], [0, 0, 1, 1], [], []>} : vector<16x72xf32>, vector<72x256xf32>, vector<16x256xf32> -> vector<16x256xf32>
    %c0_4 = arith.constant 0 : index
    %c0_5 = arith.constant 0 : index
    %4 = vector.load %arg4[%c0_4, %c0_5] : memref<16x1xf32, #tpu.memory_space<vmem>>, vector<16x1xf32>
    %5 = vector.broadcast %4 : vector<16x1xf32> to vector<16x256xf32>
    %6 = arith.addf %3, %5 : vector<16x256xf32>
    %7 = vector.extract_strided_slice %6 {offsets = [0, 0], sizes = [8, 256], strides = [1, 1]} : vector<16x256xf32> to vector<8x256xf32>
    %c0_6 = arith.constant 0 : index
    %c0_7 = arith.constant 0 : index
    %c0_8 = arith.constant 0 : index
    %8 = vector.load %arg5[%c0_6, %c0_7, %c0_8] : memref<1x8x256xf32, #tpu.memory_space<vmem>>, vector<1x8x256xf32>
    %9 = vector.shape_cast %8 : vector<1x8x256xf32> to vector<8x256xf32>
    %10 = vector.shape_cast %7 : vector<8x256xf32> to vector<1x8x256xf32>
    tpu.vector_store %arg5[%c0_6, %c0_7, %c0_8], %10 {strides = array<i32>} : memref<1x8x256xf32, #tpu.memory_space<vmem>>, vector<1x8x256xf32>,
    %11 = vector.extract_strided_slice %6 {offsets = [8, 0], sizes = [8, 256], strides = [1, 1]} : vector<16x256xf32> to vector<8x256xf32>
    %c0_9 = arith.constant 0 : index
    %c0_10 = arith.constant 0 : index
    %c0_11 = arith.constant 0 : index
    %12 = vector.load %arg6[%c0_9, %c0_10, %c0_11] : memref<1x8x256xf32, #tpu.memory_space<vmem>>, vector<1x8x256xf32>
    %13 = vector.shape_cast %12 : vector<1x8x256xf32> to vector<8x256xf32>
    %14 = vector.shape_cast %11 : vector<8x256xf32> to vector<1x8x256xf32>
    tpu.vector_store %arg6[%c0_9, %c0_10, %c0_11], %14 {strides = array<i32>} : memref<1x8x256xf32, #tpu.memory_space<vmem>>, vector<1x8x256xf32>,
    return
  }
  func.func @transform_0(%arg0: i32, %arg1: i32) -> (i32, i32, i32) {
    %c0_i32 = arith.constant 0 : i32
    %c0_i32_0 = arith.constant 0 : i32
    return %arg0, %c0_i32, %arg1 : i32, i32, i32
  }
  func.func @transform_1(%arg0: i32, %arg1: i32) -> (i32, i32) {
    %c0_i32 = arith.constant 0 : i32
    %c0_i32_0 = arith.constant 0 : i32
    %c0_i32_1 = arith.constant 0 : i32
    return %c0_i32, %c0_i32_0 : i32, i32
  }
  func.func @transform_2(%arg0: i32, %arg1: i32) -> (i32, i32) {
    %c0_i32 = arith.constant 0 : i32
    %c0_i32_0 = arith.constant 0 : i32
    %c0_i32_1 = arith.constant 0 : i32
    return %c0_i32, %c0_i32_0 : i32, i32
  }
  func.func @transform_3(%arg0: i32, %arg1: i32) -> (i32, i32, i32) {
    %c0_i32 = arith.constant 0 : i32
    %c0_i32_0 = arith.constant 0 : i32
    return %arg0, %c0_i32, %arg1 : i32, i32, i32
  }
  func.func @transform_4(%arg0: i32, %arg1: i32) -> (i32, i32, i32) {
    %c0_i32 = arith.constant 0 : i32
    %c0_i32_0 = arith.constant 0 : i32
    return %arg0, %c0_i32, %arg1 : i32, i32, i32
  }
}

</mosaic_0001>

<llo_original>
// kernel: tpu_custom_call.1
$region0: #{tpu_custom_call.1}
  #allocation0 [shape = 'u32[]', space=smem, size = 0x4, offset = 0x4, fixed_abs, tag = 'smem constant byte address 0x4 - core index']
  #allocation1 [shape = 'u32[144,128]{1,0:T(1,128)}', space=vmem, size = 0x12000, scoped, tag = 'internal scratch']
  %s0 = inlined_call_operand.hbm [shape: f32[2,72,256], index: 0, kind: input, shape index: {}]
  %s1 = inlined_call_operand.vmem [shape: f32[16,72], index: 1, kind: input, shape index: {}]
  %s2 = inlined_call_operand.vmem [shape: f32[16,1], index: 2, kind: input, shape index: {}]
  %s3 = inlined_call_operand.hbm [shape: f32[2,8,256], index: 3, kind: output, shape index: {0}]
  %s4 = inlined_call_operand.hbm [shape: f32[2,8,256], index: 4, kind: output, shape index: {1}]
  %5 = xla_tuple %s3, %s4
  %s6 = sld [smem:[#allocation0]]
  $region57: #{tpu_custom_call.1} parent=0
    _
  %s8 = ssub.s32 1, %s6
  %s9 = scalar_select 0, %s8, %s6
  $region1: #{tpu_custom_call.1} parent=0
    #allocation2 [shape = 'u8[147456]{0}', space=vmem, size = 0x24000, scoped, tag = 'input window, operand 0']
    #allocation3 [shape = 's32[2]{0}', space=sflag, size = 0x8, scoped, tag = 'scoped memory for tpu_custom_call.1']
    #allocation4 [shape = 's32[2]{0}', space=sflag, size = 0x8, scoped, tag = 'scoped memory for tpu_custom_call.1']
    #allocation5 [shape = 'u8[16384]{0}', space=vmem, size = 0x4000, scoped, tag = 'output window, operand 0']
    #allocation6 [shape = 'u8[16384]{0}', space=vmem, size = 0x4000, scoped, tag = 'output window, operand 1']
    #allocation7 [shape = 's32[2]{0}', space=sflag, size = 0x8, scoped, tag = 'scoped memory for tpu_custom_call.1']
    %10 = vsyncpa [#allocation3], 0
    %s11 = scalar_lea.sflag [#allocation3], 1
    %12 = vsyncpa %s11, 0
    %13 = vsyncpa [#allocation4], 0
    %s14 = scalar_lea.sflag [#allocation4], 1
    %15 = vsyncpa %s14, 0
    %16 = vsyncpa [#allocation7], 0
    %s17 = scalar_lea.sflag [#allocation7], 1
    %18 = vsyncpa %s17, 0
    loop: start=0, step=1, limit=4
    $region2: #{tpu_custom_call.1} parent=1 // loop_pre_header
      _
    $region3: #{tpu_custom_call.1} parent=1 // loop_header
      %s20 = sphi 0, %s24
      %p21 = scmp.ge.s32.totalorder %s20, 4
      %s27 = sphi 0, %s39
      %s28 = sphi 0, %s35
      %s29 = sphi 0, %s27
      %s30 = sphi 0, %s28
      %s31 = sphi 0, %s29
      %s32 = sphi 0, %s30
      %s44 = sphi 0, %s46
      %s47 = sphi 0, %s44
      %s48 = sphi 0, %s47
      %s64 = sphi 0, %s48
      %s68 = sphi 0, %s68
      %s70 = sphi 0, %s68
      %s71 = sphi 0, %s70
      %s85 = sphi 0, %s71
      %s89 = sphi 0, %s89
      %s91 = sphi 0, %s89
      %s92 = sphi 0, %s91
      %s106 = sphi 0, %s92
      %s114 = sphi 0, %s116
      %s117 = sphi 0, %s114
      %s118 = sphi 0, %s117
      %s134 = sphi 0, %s118
      %s142 = sphi 0, %s144
      %s145 = sphi 0, %s142
      %s146 = sphi 0, %s145
      %s162 = sphi 0, %s146
    $region4: #{tpu_custom_call.1} parent=1 // loop_header_branch
      %23 = sbr.rel (%p21) target = $region8
    $region5: #{tpu_custom_call.1} parent=1 // loop_body
      %s25 = ssub.s32 %s20, 1
      %s26 = ssub.s32 %s20, 2
      %s33 = sadd.s32 1, %s28
      %p34 = scmp.ge.s32.totalorder %s33, 1
      %s35 = scalar_select %p34, 0, %s33
      %s36 = sadd.s32 1, %s27
      %s37 = scalar_select %p34, %s36, %s27
      %p38 = scmp.ge.s32.totalorder %s37, 2
      %s39 = scalar_select %p38, 0, %s37
      %s40 = ssub.s32 %s27, %s39
      %s41 = ssub.s32 %s28, %s35
      %s42 = sor.u32 %s40, %s41
      %p43 = scmp.eq.s32.totalorder %s42, 0
      %s45 = sadd.s32 %s44, 1
      %s46 = scalar_select %p43, %s44, %s45
      %p49 = pneg %p43
      %p50 = scmp.eq.s32.totalorder %s20, 1
      %p51 = por %p49, %p50
      %p52 = scmp.ne.s32.totalorder %s44, %s47
      %p53 = scmp.eq.s32.totalorder %s20, 0
      %p54 = por %p52, %p53
      %p55 = scmp.ne.s32.totalorder %s44, %s47
      %p56 = scmp.eq.s32.totalorder %s25, 1
      %p57 = por %p55, %p56
      %p58 = scmp.ne.s32.totalorder %s47, %s48
      %p59 = scmp.eq.s32.totalorder %s25, 0
      %p60 = por %p58, %p59
      %p61 = scmp.ne.s32.totalorder %s47, %s48
      %p62 = scmp.eq.s32.totalorder %s26, 1
      %p63 = por %p61, %p62
      %p65 = scmp.ne.s32.totalorder %s48, %s64
      %p66 = scmp.eq.s32.totalorder %s26, 0
      %p67 = por %p65, %p66
      %s69 = sadd.s32 %s68, 1
      %p72 = scmp.eq.s32.totalorder %s20, 1
      %p73 = scmp.ne.s32.totalorder %s68, %s70
      %p74 = scmp.eq.s32.totalorder %s20, 0
      %p75 = por %p73, %p74
      %p76 = scmp.ne.s32.totalorder %s68, %s70
      %p77 = scmp.eq.s32.totalorder %s25, 1
      %p78 = por %p76, %p77
      %p79 = scmp.ne.s32.totalorder %s70, %s71
      %p80 = scmp.eq.s32.totalorder %s25, 0
      %p81 = por %p79, %p80
      %p82 = scmp.ne.s32.totalorder %s70, %s71
      %p83 = scmp.eq.s32.totalorder %s26, 1
      %p84 = por %p82, %p83
      %p86 = scmp.ne.s32.totalorder %s71, %s85
      %p87 = scmp.eq.s32.totalorder %s26, 0
      %p88 = por %p86, %p87
      %s90 = sadd.s32 %s89, 1
      %p93 = scmp.eq.s32.totalorder %s20, 1
      %p94 = scmp.ne.s32.totalorder %s89, %s91
      %p95 = scmp.eq.s32.totalorder %s20, 0
      %p96 = por %p94, %p95
      %p97 = scmp.ne.s32.totalorder %s89, %s91
      %p98 = scmp.eq.s32.totalorder %s25, 1
      %p99 = por %p97, %p98
      %p100 = scmp.ne.s32.totalorder %s91, %s92
      %p101 = scmp.eq.s32.totalorder %s25, 0
      %p102 = por %p100, %p101
      %p103 = scmp.ne.s32.totalorder %s91, %s92
      %p104 = scmp.eq.s32.totalorder %s26, 1
      %p105 = por %p103, %p104
      %p107 = scmp.ne.s32.totalorder %s92, %s106
      %p108 = scmp.eq.s32.totalorder %s26, 0
      %p109 = por %p107, %p108
      %s110 = ssub.s32 %s27, %s39
      %s111 = ssub.s32 %s28, %s35
      %s112 = sor.u32 %s110, %s111
      %p113 = scmp.eq.s32.totalorder %s112, 0
      %s115 = sadd.s32 %s114, 1
      %s116 = scalar_select %p113, %s114, %s115
      %p119 = pneg %p113
      %p120 = scmp.eq.s32.totalorder %s20, 1
      %p121 = por %p119, %p120
      %p122 = scmp.ne.s32.totalorder %s114, %s117
      %p123 = scmp.eq.s32.totalorder %s20, 0
      %p124 = por %p122, %p123
      %p125 = scmp.ne.s32.totalorder %s114, %s117
      %p126 = scmp.eq.s32.totalorder %s25, 1
      %p127 = por %p125, %p126
      %p128 = scmp.ne.s32.totalorder %s117, %s118
      %p129 = scmp.eq.s32.totalorder %s25, 0
      %p130 = por %p128, %p129
      %p131 = scmp.ne.s32.totalorder %s117, %s118
      %p132 = scmp.eq.s32.totalorder %s26, 1
      %p133 = por %p131, %p132
      %p135 = scmp.ne.s32.totalorder %s118, %s134
      %p136 = scmp.eq.s32.totalorder %s26, 0
      %p137 = por %p135, %p136
      %s138 = ssub.s32 %s27, %s39
      %s139 = ssub.s32 %s28, %s35
      %s140 = sor.u32 %s138, %s139
      %p141 = scmp.eq.s32.totalorder %s140, 0
      %s143 = sadd.s32 %s142, 1
      %s144 = scalar_select %p141, %s142, %s143
      %p147 = pneg %p141
      %p148 = scmp.eq.s32.totalorder %s20, 1
      %p149 = por %p147, %p148
      %p150 = scmp.ne.s32.totalorder %s142, %s145
      %p151 = scmp.eq.s32.totalorder %s20, 0
      %p152 = por %p150, %p151
      %p153 = scmp.ne.s32.totalorder %s142, %s145
      %p154 = scmp.eq.s32.totalorder %s25, 1
      %p155 = por %p153, %p154
      %p156 = scmp.ne.s32.totalorder %s145, %s146
      %p157 = scmp.eq.s32.totalorder %s25, 0
      %p158 = por %p156, %p157
      %p159 = scmp.ne.s32.totalorder %s145, %s146
      %p160 = scmp.eq.s32.totalorder %s26, 1
      %p161 = por %p159, %p160
      %p163 = scmp.ne.s32.totalorder %s146, %s162
      %p164 = scmp.eq.s32.totalorder %s26, 0
      %p165 = por %p163, %p164
      %p166 = scmp.le.s32.totalorder 1, %s20
      %p167 = scmp.lt.s32.totalorder %s20, 3
      %p168 = pnand %p166, %p167
      %p169 = pneg %p168
      // Predicated region
      $region9: #{tpu_custom_call.1} parent=5 // pred_check
        _
      $region10: #{tpu_custom_call.1} parent=5 // pred_check_branch
        %171 = sbr.rel (%p168) target = $region12
      $region11: #{tpu_custom_call.1} parent=5 // pred_region
        %s172 = ssub.s32 %s20, 1
        // Predicated region
        $region13: #{tpu_custom_call.1} parent=11 // pred_check
          %p173 = pneg %p81
        $region14: #{tpu_custom_call.1} parent=11 // pred_check_branch
          %175 = sbr.rel (%p173) target = $region16
        $region15: #{tpu_custom_call.1} parent=11 // pred_region
          _
        $region16: #{tpu_custom_call.1} parent=11 // pred_fallthru
          _
        // Predicated region
        $region17: #{tpu_custom_call.1} parent=11 // pred_check
          %p176 = pneg %p102
        $region18: #{tpu_custom_call.1} parent=11 // pred_check_branch
          %178 = sbr.rel (%p176) target = $region20
        $region19: #{tpu_custom_call.1} parent=11 // pred_region
          _
        $region20: #{tpu_custom_call.1} parent=11 // pred_fallthru
          _
      $region12: #{tpu_custom_call.1} parent=5 // pred_fallthru
        _
      %p179 = scmp.lt.s32.totalorder %s20, 2
      // Predicated region
      $region21: #{tpu_custom_call.1} parent=5 // pred_check
        %p180 = pneg %p179
      $region22: #{tpu_custom_call.1} parent=5 // pred_check_branch
        %182 = sbr.rel (%p180) target = $region24
      $region23: #{tpu_custom_call.1} parent=5 // pred_region
        // Predicated region
        $region25: #{tpu_custom_call.1} parent=23 // pred_check
          %p183 = pneg %p54
        $region26: #{tpu_custom_call.1} parent=23 // pred_check_branch
          %185 = sbr.rel (%p183) target = $region28
        $region27: #{tpu_custom_call.1} parent=23 // pred_region
          %s186 = sand.u32 %s44, 1
          %s187 = scalar_lea.sflag [#allocation3], %s186
          %s188 = sand.u32 %s44, 1
          %s189 = smul.addr %s188, 144
          %s190 = scalar_lea.vmem [#allocation2], %s189
          %s191 = smul.u32 2, %s28
          %s193 = ssub.s32 2304, 2304
          %194 = vsyncadd %s187, %s193
          %s195 = smul.addr %s27, 18
          %s196 = sadd.s32 %s191, %s195
          %s197 = smul.addr %s196, 128
          %s198 = scalar_lea.hbm %s0, %s197
          %s199 = sshll.u32 %s190, 4
          %s200 = int_to_ptr.vmem [resolvable:$true] %s199
          %205 = dma.hbm_to_vmem [thread:$0]  %s198, 2304, %s200, %s187, 256, 256, 16
        $region28: #{tpu_custom_call.1} parent=23 // pred_fallthru
          _
      $region24: #{tpu_custom_call.1} parent=5 // pred_fallthru
        _
      %p206 = scmp.le.s32.totalorder 1, %s20
      %p207 = scmp.lt.s32.totalorder %s20, 3
      %p208 = pnand %p206, %p207
      %p209 = pneg %p208
      // Predicated region
      $region29: #{tpu_custom_call.1} parent=5 // pred_check
        _
      $region30: #{tpu_custom_call.1} parent=5 // pred_check_branch
        %211 = sbr.rel (%p208) target = $region32
      $region31: #{tpu_custom_call.1} parent=5 // pred_region
        %s212 = ssub.s32 %s20, 1
        %s213 = sand.u32 %s47, 1
        %s214 = scalar_lea.sflag [#allocation3], %s213
        %s215 = sand.u32 %s47, 1
        %s216 = smul.addr %s215, 144
        %s217 = scalar_lea.vmem [#allocation2], %s216
        // Predicated region
        $region33: #{tpu_custom_call.1} parent=31 // pred_check
          %p218 = pneg %p60
        $region34: #{tpu_custom_call.1} parent=31 // pred_check_branch
          %220 = sbr.rel (%p218) target = $region36
        $region35: #{tpu_custom_call.1} parent=31 // pred_region
          %221 = dma.done %s214, 2304
        $region36: #{tpu_custom_call.1} parent=31 // pred_fallthru
          _
        %s222 = sand.u32 %s47, 1
        %s223 = scalar_lea.sflag [#allocation3], %s222
        %s224 = sand.u32 %s47, 1
        %s225 = smul.addr %s224, 144
        %s226 = scalar_lea.vmem [#allocation2], %s225
        %p227 = pneg %p60
        %p228 = pneg %p57
        %p229 = pneg %p81
        %p230 = pneg %p78
        %p231 = pneg %p102
        %p232 = pneg %p99
        %p233 = pneg %p130
        %p234 = pneg %p127
        %s235 = sand.u32 %s117, 1
        %s236 = scalar_lea.sflag [#allocation4], %s235
        %s237 = sand.u32 %s117, 1
        %s238 = smul.addr %s237, 16
        %s239 = scalar_lea.vmem [#allocation5], %s238
        %p240 = pneg %p158
        %p241 = pneg %p155
        %s242 = sand.u32 %s145, 1
        %s243 = scalar_lea.sflag [#allocation7], %s242
        %s244 = sand.u32 %s145, 1
        %s245 = smul.addr %s244, 16
        %s246 = scalar_lea.vmem [#allocation6], %s245
        %s247 = smul.u32 2, %s30
        %s248 = smul.u32 2, %s30
        %s249 = smul.u32 2, %s30
        %v250 = vld [vmem:[%s1] sm:$0xff]
        %v251 = vld [vmem:[%s1 + $0x8] sm:$0xff]
        %v252 = vld [vmem:[%s217] sm:$0xff]
        %v253 = vld [vmem:[%s217 + $0x8] sm:$0xff]
        %v254 = vld [vmem:[%s217 + $0x10] sm:$0xff]
        %v255 = vld [vmem:[%s217 + $0x18] sm:$0xff]
        %v256 = vld [vmem:[%s217 + $0x20] sm:$0xff]
        %v257 = vld [vmem:[%s217 + $0x28] sm:$0xff]
        %v258 = vld [vmem:[%s217 + $0x30] sm:$0xff]
        %v259 = vld [vmem:[%s217 + $0x38] sm:$0xff]
        %v260 = vld [vmem:[%s217 + $0x40] sm:$0xff]
        %v261 = vld [vmem:[%s217 + $0x48] sm:$0xff]
        %v262 = vld [vmem:[%s217 + $0x50] sm:$0xff]
        %v263 = vld [vmem:[%s217 + $0x58] sm:$0xff]
        %v264 = vld [vmem:[%s217 + $0x60] sm:$0xff]
        %v265 = vld [vmem:[%s217 + $0x68] sm:$0xff]
        %v266 = vld [vmem:[%s217 + $0x70] sm:$0xff]
        %v267 = vld [vmem:[%s217 + $0x78] sm:$0xff]
        %v268 = vld [vmem:[%s217 + $0x80] sm:$0xff]
        %v269 = vld [vmem:[%s217 + $0x88] sm:$0xff]
        %v270 = vld [vmem:[%s2] sm:$0xff]
        %v271 = vld [vmem:[%s2 + $0x8] sm:$0xff]
        %273 = vset.pattern.permute.xlu0 0
        %274 = vperm.xlu0 %273, %v270
        %v275 = vpop.permute.xlu0 %274
        %278 = vset.pattern.permute.xlu0 0
        %279 = vperm.xlu0 %278, %v271
        %v280 = vpop.permute.xlu0 %279
        %vm282 = vcmask 588800
        %v284 = vsel %vm282, %v250, 0
        %v287 = vsel %vm282, %v251, 0
        %289 = vmatprep.subr.mxu0 %v253
        %290 = vmatpush1.msra.mxu0 %v252
        %291 = vmatprep.subr.mxu0 %v255
        %292 = vmatpush1.msra.mxu0 %v254
        %293 = vmatprep.subr.mxu0 %v257
        %294 = vmatpush1.msra.mxu0 %v256
        %295 = vmatprep.subr.mxu0 %v259
        %296 = vmatpush1.msra.mxu0 %v258
        %297 = vmatprep.subr.mxu0 %v261
        %298 = vmatpush1.msra.mxu0 %v260
        %299 = vmatprep.subr.mxu0 %v263
        %300 = vmatpush1.msra.mxu0 %v262
        %301 = vmatprep.subr.mxu0 %v265
        %302 = vmatpush1.msra.mxu0 %v264
        %303 = vmatprep.subr.mxu0 %v267
        %304 = vmatpush1.msra.mxu0 %v266
        %305 = vmatprep.subr.mxu0 %v269
        %306 = vmatpush1.msra.mxu0 %v268
        %307 = vmatprep.subr.mxu0 0.0
        %308 = vmatpush1.msra.mxu0 0.0
        %309 = vmatprep.subr.mxu0 0.0
        %310 = vmatpush1.msra.mxu0 0.0
        %311 = vmatprep.subr.mxu0 0.0
        %312 = vmatpush1.msra.mxu0 0.0
        %313 = vmatprep.subr.mxu0 0.0
        %314 = vmatpush1.msra.mxu0 0.0
        %315 = vmatprep.subr.mxu0 0.0
        %316 = vmatpush1.msra.mxu0 0.0
        %317 = vmatprep.subr.mxu0 0.0
        %318 = vmatpush1.msra.mxu0 0.0
        %319 = vmatprep.subr.mxu0 0.0
        %320 = vmatpush1.msra.mxu0 0.0
        %321 = vmatprep.subr.mxu0 0.0
        %322 = vmatpush1.msra.mxu0 0.0
        %323 = vmatprep.subr.mxu0 0.0
        %324 = vmatpush1.msra.mxu0 0.0
        %325 = vmatprep.subr.mxu0 0.0
        %326 = vmatpush1.msra.mxu0 0.0
        %327 = vmatprep.subr.mxu0 0.0
        %328 = vmatpush1.msra.mxu0 0.0
        %329 = vmatprep.subr.mxu0 0.0
        %330 = vmatpush1.msra.mxu0 0.0
        %331 = vmatprep.subr.mxu0 0.0
        %332 = vmatpush1.msra.mxu0 0.0
        %333 = vmatprep.subr.mxu0 0.0
        %334 = vmatpush1.msra.mxu0 0.0
        %335 = vmatprep.subr.mxu0 0.0
        %336 = vmatpush1.msra.mxu0 0.0
        %337 = vmatprep.subr.mxu0 0.0
        %338 = vmatpush1.msra.mxu0 0.0
        %339 = vmatprep.subr.mxu0 0.0
        %340 = vmatpush1.msra.mxu0 0.0
        %341 = vmatprep.subr.mxu0 0.0
        %342 = vmatpush1.msra.mxu0 0.0
        %343 = vmatprep.subr.mxu0 0.0
        %344 = vmatpush1.msra.mxu0 0.0
        %345 = vmatprep.subr.mxu0 0.0
        %346 = vmatpush1.msra.mxu0 0.0
        %347 = vmatprep.subr.mxu0 0.0
        %348 = vmatpush1.msra.mxu0 0.0
        %349 = vmatprep.subr.mxu0 0.0
        %350 = vmatpush1.msra.mxu0 0.0
        %351 = vmatprep.subr.mxu0 0.0
        %352 = vmatpush1.msra.mxu0 0.0
        %353 = vmatprep.mubr.f32.mxu0 0.0
        %354 = vmatmul.mubr.f32.gmra.mrb[0].mxu0 %v284
        %v355 = vpop.f32.mrb[0].mxu0
        %v356 = vadd.f32 %v275, %v355
        %v357 = vpop.f32.mrb[0].mxu0
        %v358 = vadd.f32 %v275, %v357
        %359 = vmatprep.mubr.f32.mxu0 0.0
        %360 = vmatmul.mubr.f32.gmra.mrb[0].mxu0 %v287
        %v361 = vpop.f32.mrb[0].mxu0
        %v362 = vadd.f32 %v280, %v361
        %v363 = vpop.f32.mrb[0].mxu0
        %v364 = vadd.f32 %v280, %v363
        %365 = vdwg.mxu0
        %366 = vst [vmem:[%s239] sm:$0xff] %v356
        %367 = vst [vmem:[%s239 + $0x8] sm:$0xff] %v358
        %368 = vst [vmem:[%s246] sm:$0xff] %v362
        %369 = vst [vmem:[%s246 + $0x8] sm:$0xff] %v364
        %s370 = sand.u32 %s117, 1
        %s371 = scalar_lea.sflag [#allocation4], %s370
        %s372 = sand.u32 %s117, 1
        %s373 = smul.addr %s372, 16
        %s374 = scalar_lea.vmem [#allocation5], %s373
        %s375 = sand.u32 %s145, 1
        %s376 = scalar_lea.sflag [#allocation7], %s375
        %s377 = sand.u32 %s145, 1
        %s378 = smul.addr %s377, 16
        %s379 = scalar_lea.vmem [#allocation6], %s378
        // Predicated region
        $region37: #{tpu_custom_call.1} parent=31 // pred_check
          %p380 = pneg %p127
        $region38: #{tpu_custom_call.1} parent=31 // pred_check_branch
          %382 = sbr.rel (%p380) target = $region40
        $region39: #{tpu_custom_call.1} parent=31 // pred_region
          %s383 = smul.u32 2, %s30
          %s385 = ssub.s32 256, 256
          %386 = vsyncadd %s371, %s385
          %s387 = smul.addr %s29, 2
          %s388 = sadd.s32 %s383, %s387
          %s389 = smul.addr %s388, 128
          %s390 = scalar_lea.hbm %s3, %s389
          %s392 = sshll.u32 %s374, 4
          %s393 = int_to_ptr.vmem [resolvable:$true] %s392
          %395 = dma.vmem_to_hbm [thread:$0]  %s393, 256, %s390, %s371
        $region40: #{tpu_custom_call.1} parent=31 // pred_fallthru
          _
        // Predicated region
        $region41: #{tpu_custom_call.1} parent=31 // pred_check
          %p396 = pneg %p155
        $region42: #{tpu_custom_call.1} parent=31 // pred_check_branch
          %398 = sbr.rel (%p396) target = $region44
        $region43: #{tpu_custom_call.1} parent=31 // pred_region
          %s399 = smul.u32 2, %s30
          %s401 = ssub.s32 256, 256
          %402 = vsyncadd %s376, %s401
          %s403 = smul.addr %s29, 2
          %s404 = sadd.s32 %s399, %s403
          %s405 = smul.addr %s404, 128
          %s406 = scalar_lea.hbm %s4, %s405
          %s408 = sshll.u32 %s379, 4
          %s409 = int_to_ptr.vmem [resolvable:$true] %s408
          %411 = dma.vmem_to_hbm [thread:$0]  %s409, 256, %s406, %s376
        $region44: #{tpu_custom_call.1} parent=31 // pred_fallthru
          _
      $region32: #{tpu_custom_call.1} parent=5 // pred_fallthru
        _
      %p412 = scmp.le.s32.totalorder 2, %s20
      // Predicated region
      $region45: #{tpu_custom_call.1} parent=5 // pred_check
        %p413 = pneg %p412
      $region46: #{tpu_custom_call.1} parent=5 // pred_check_branch
        %415 = sbr.rel (%p413) target = $region48
      $region47: #{tpu_custom_call.1} parent=5 // pred_region
        %s416 = ssub.s32 %s20, 2
        // Predicated region
        $region49: #{tpu_custom_call.1} parent=47 // pred_check
          %p417 = pneg %p133
        $region50: #{tpu_custom_call.1} parent=47 // pred_check_branch
          %419 = sbr.rel (%p417) target = $region52
        $region51: #{tpu_custom_call.1} parent=47 // pred_region
          %s420 = sand.u32 %s118, 1
          %s421 = scalar_lea.sflag [#allocation4], %s420
          %s422 = sand.u32 %s118, 1
          %s423 = smul.addr %s422, 16
          %s424 = scalar_lea.vmem [#allocation5], %s423
          %425 = dma.done %s421, 256
        $region52: #{tpu_custom_call.1} parent=47 // pred_fallthru
          _
        // Predicated region
        $region53: #{tpu_custom_call.1} parent=47 // pred_check
          %p426 = pneg %p161
        $region54: #{tpu_custom_call.1} parent=47 // pred_check_branch
          %428 = sbr.rel (%p426) target = $region56
        $region55: #{tpu_custom_call.1} parent=47 // pred_region
          %s429 = sand.u32 %s146, 1
          %s430 = scalar_lea.sflag [#allocation7], %s429
          %s431 = sand.u32 %s146, 1
          %s432 = smul.addr %s431, 16
          %s433 = scalar_lea.vmem [#allocation6], %s432
          %434 = dma.done %s430, 256
        $region56: #{tpu_custom_call.1} parent=47 // pred_fallthru
          _
      $region48: #{tpu_custom_call.1} parent=5 // pred_fallthru
        _
    $region6: #{tpu_custom_call.1} parent=1 // loop_footer
      %s24 = sadd.s32 1, %s20
    $region7: #{tpu_custom_call.1} parent=1 // loop_footer_branch
      %19 = sbr.rel target = $region3
    $region8: #{tpu_custom_call.1} parent=1 // loop_exit
      _
    %435 = vsyncpa [#allocation3], 1
    %s436 = scalar_lea.sflag [#allocation3], 1
    %437 = vsyncpa %s436, 1
    %438 = vsyncpa [#allocation4], 1
    %s439 = scalar_lea.sflag [#allocation4], 1
    %440 = vsyncpa %s439, 1
    %441 = vsyncpa [#allocation7], 1
    %s442 = scalar_lea.sflag [#allocation7], 1
    %443 = vsyncpa %s442, 1

</llo_original>
